<compile_context>
chip_gen: v6e
topology: v6e:2x2x1
jax: 0.10.0
libtpu: 0.0.40
codegen_flags: <defaults>
</compile_context>

<pallas_src>
import functools

import jax
import jax.numpy as jnp
from jax.experimental import pallas as pl
from jax.experimental.pallas import tpu as pltpu

# Module-level globals referenced (but not defined) in the PyTorch snippet.
# TODO(synk): exact values live elsewhere in ATORpt_AMANN.py; these are the
# repo's typical defaults and are defined here deterministically.
ACTIVATION_MAX_VAL = 10.0                 # activationMaxVal
MUL_EMU_OFFSET_VAL = 100.0                # multiplicativeEmulationFunctionOffsetVal
MUL_EMU_PRE_MIN_VAL = 1e-9                # multiplicativeEmulationFunctionPreMinVal
MUL_EMU_PRE_MAX_VAL = 1e+9                # multiplicativeEmulationFunctionPreMaxVal
MUL_EMU_POST_MAX_VAL = 20.0               # multiplicativeEmulationFunctionPostMaxVal


def _elementwise_pre(x):
    """clipActivation + multiplicativeEmulationFunctionPre (kept in f32)."""
    xa = jnp.clip(x, -ACTIVATION_MAX_VAL, ACTIVATION_MAX_VAL)
    xm = jnp.log(jnp.clip(xa + MUL_EMU_OFFSET_VAL,
                          MUL_EMU_PRE_MIN_VAL, MUL_EMU_PRE_MAX_VAL))
    return xa, xm


def _am_kernel_fused(x_ref, wblk_ref, out_ref):
    """Single-MXU-pass variant for small F_in.

    wblk_ref holds blockdiag(Wa, Wm), shape (2*F_in, F_out), so one matmul
    produces [Za | Zm] already in torch.cat([Aa, Am], dim=1) column order:
    no output concatenation or split is needed.
    """
    x = x_ref[...].astype(jnp.float32)
    xa, xm = _elementwise_pre(x)
    xcat = jnp.concatenate([xa, xm], axis=1).astype(wblk_ref.dtype)
    z = jnp.dot(xcat, wblk_ref[...], preferred_element_type=jnp.float32)

    # multiplicativeEmulationFunctionPost on the right half only, applied via a
    # lane mask (exp over the additive half is free EUP filler + one select).
    f_half = wblk_ref.shape[1] // 2
    col = jax.lax.broadcasted_iota(jnp.int32, z.shape, 1)
    zm = jnp.exp(jnp.clip(z, -MUL_EMU_POST_MAX_VAL, MUL_EMU_POST_MAX_VAL))
    zm = zm - MUL_EMU_OFFSET_VAL
    z = jnp.where(col >= f_half, zm, z)

    # useBias=False (module default) -> no bias add.  ReLU.
    out_ref[...] = jnp.maximum(z, 0.0).astype(out_ref.dtype)


def _am_kernel_split(x_ref, wa_ref, wm_ref, out_ref, *, f_half):
    """Two-matmul variant for large F_in; output halves written via direct
    ref-slice stores (no concatenate of the output tile)."""
    x = x_ref[...].astype(jnp.float32)
    xa, xm = _elementwise_pre(x)
    za = jnp.dot(xa.astype(wa_ref.dtype), wa_ref[...],
                 preferred_element_type=jnp.float32)
    zm = jnp.dot(xm.astype(wm_ref.dtype), wm_ref[...],
                 preferred_element_type=jnp.float32)
    zm = jnp.exp(jnp.clip(zm, -MUL_EMU_POST_MAX_VAL, MUL_EMU_POST_MAX_VAL))
    zm = zm - MUL_EMU_OFFSET_VAL
    out_ref[:, :f_half] = jnp.maximum(za, 0.0).astype(out_ref.dtype)
    out_ref[:, f_half:] = jnp.maximum(zm, 0.0).astype(out_ref.dtype)


def _round_up(n, m):
    return ((n + m - 1) // m) * m


def layer_additive_multiplicative(x, wa, wm, *, block_m=512,
                                  matmul_dtype=jnp.float32,
                                  out_dtype=jnp.float32):
    """Forward of LayerAdditiveMultiplicativeClass (useBias=False,
    useMultiplicativeUnits=True).

    x : (B, F_in);  wa / wm : (F_in, F_half).  Returns (B, 2*F_half).
    matmul_dtype=jnp.bfloat16 halves x/W HBM+VMEM traffic on v5e/v6e;
    out_dtype=jnp.bfloat16 halves output writeback.  Defaults are f32 so
    numerics match the reference exactly.
    """
    # TODO(synk): useBias=True and useMultiplicativeUnits=False branches of the
    # PyTorch module are not implemented (module defaults used).
    B, F_in = x.shape
    F_half = wa.shape[1]
    assert wm.shape == (F_in, F_half)
    F_out = 2 * F_half
    matmul_dtype = jnp.dtype(matmul_dtype)
    out_dtype = jnp.dtype(out_dtype)

    # For small reduction dims, one block-diagonal matmul (single MXU K pass on
    # v6e/v7x) replaces the two tiny matmuls and emits [Aa|Am] column order.
    fused = (2 * F_in) <= 256
    if fused:
        w_blk = jnp.zeros((2 * F_in, F_out), matmul_dtype)
        w_blk = w_blk.at[:F_in, :F_half].set(wa.astype(matmul_dtype))
        w_blk = w_blk.at[F_in:, F_half:].set(wm.astype(matmul_dtype))
        kernel = _am_kernel_fused
        weights = (w_blk,)
    else:
        kernel = functools.partial(_am_kernel_split, f_half=F_half)
        weights = (wa.astype(matmul_dtype), wm.astype(matmul_dtype))
    w_bytes = sum(int(w.size) * w.dtype.itemsize for w in weights)

    # Batch tile: as large as a conservative VMEM budget allows (tiny grid
    # steps are pure overhead), rounded to the 8-row sublane quantum, with at
    # least 2 grid steps when B allows so v7x's 2nd TensorCore isn't idle.
    vmem_budget = 24 * 2 ** 20
    per_row_bytes = 2 * (F_in * 4 + F_out * out_dtype.itemsize)  # dbl-buffered in+out
    bm_cap = max(8, ((vmem_budget - 2 * w_bytes) // max(per_row_bytes, 1)) // 8 * 8)
    bm = max(8, min(_round_up(block_m, 8), bm_cap, _round_up(B, 8)))
    B_pad = _round_up(B, bm)
    if B_pad // bm < 2 and B >= 16:
        bm = _round_up(-(-B // 2), 8)
        B_pad = _round_up(B, bm)

    if B_pad != B:
        x = jnp.pad(x, ((0, B_pad - B), (0, 0)))
    grid = (B_pad // bm,)

    vmem_needed = (2 * bm * F_in * 4 + 2 * w_bytes
                   + 2 * bm * F_out * out_dtype.itemsize)
    vmem_limit = int(min(max(2 * vmem_needed, 32 * 2 ** 20), 48 * 2 ** 20))

    # NOTE: for production sizes choose F_half as a multiple of 128 so the
    # output tile is lane-dense (avoids masked vst on every row).
    # TODO(synk): weights are loaded whole; very large F_in/F_half would need
    # K/N tiling with a VMEM accumulator (not needed at ATORpt layer sizes).
    def _wspec(shape, pipeline_mode):
        if pipeline_mode is None:
            return pl.BlockSpec(shape, lambda i: (0, 0))
        return pl.BlockSpec(shape, lambda i: (0, 0), pipeline_mode=pipeline_mode)

    def _call(weight_pipeline_mode):
        return pl.pallas_call(
            kernel,
            out_shape=jax.ShapeDtypeStruct((B_pad, F_out), out_dtype),
            grid_spec=pltpu.PrefetchScalarGridSpec(
                num_scalar_prefetch=0,
                grid=grid,
                in_specs=[pl.BlockSpec((bm, F_in), lambda i: (i, 0))]
                         + [_wspec(tuple(w.shape), weight_pipeline_mode)
                            for w in weights],
                out_specs=pl.BlockSpec((bm, F_out), lambda i: (i, 0)),
            ),
            compiler_params=pltpu.CompilerParams(
                dimension_semantics=("parallel",),
                vmem_limit_bytes=vmem_limit),
        )(x, *weights)

    try:
        # Weight blocks never change across the grid -> single VMEM buffer.
        out = _call(pl.Buffered(1))
    except Exception:  # fallback if Buffered(1) is unsupported in this jax
        out = _call(None)

    return out[:B] if B_pad != B else out


def _reference(x, wa, wm):
    """Pure-JAX reference mirroring the PyTorch forward (useBias=False)."""
    xa = jnp.clip(x, -ACTIVATION_MAX_VAL, ACTIVATION_MAX_VAL)
    xm = jnp.log(jnp.clip(xa + MUL_EMU_OFFSET_VAL,
                          MUL_EMU_PRE_MIN_VAL, MUL_EMU_PRE_MAX_VAL))
    za = xa @ wa
    zm = jnp.exp(jnp.clip(xm @ wm, -MUL_EMU_POST_MAX_VAL,
                          MUL_EMU_POST_MAX_VAL)) - MUL_EMU_OFFSET_VAL
    return jnp.concatenate([jnp.maximum(za, 0.0), jnp.maximum(zm, 0.0)], axis=1)


if __name__ == "__main__":
    key = jax.random.PRNGKey(0)
    kx, ka, km, kx2, ka2, km2 = jax.random.split(key, 6)

    # 1) Module-default toy shape: batch=8, inputFeatures=32, outputFeatures=32
    #    (exercises the fused block-diagonal path).
    B, F_IN, F_OUT = 8, 32, 32
    F_HALF = F_OUT // 2
    x = jax.random.normal(kx, (B, F_IN), dtype=jnp.float32)
    wa = jax.random.normal(ka, (F_IN, F_HALF), dtype=jnp.float32)
    wm = jax.random.normal(km, (F_IN, F_HALF), dtype=jnp.float32)

    out = jax.block_until_ready(layer_additive_multiplicative(x, wa, wm))
    ref = _reference(x, wa, wm)
    assert out.shape == (B, F_OUT)
    assert not bool(jnp.isnan(out).any())
    assert jnp.allclose(out, ref, rtol=1e-4, atol=1e-3), "fused path mismatch"

    # 2) Slightly larger (still small) shape exercising the two-matmul path,
    #    batch padding, and a >=2-step parallel grid.
    B2, F_IN2, F_OUT2 = 300, 160, 256
    F_HALF2 = F_OUT2 // 2
    x2 = jax.random.normal(kx2, (B2, F_IN2), dtype=jnp.float32)
    wa2 = jax.random.normal(ka2, (F_IN2, F_HALF2), dtype=jnp.float32)
    wm2 = jax.random.normal(km2, (F_IN2, F_HALF2), dtype=jnp.float32)

    out2 = jax.block_until_ready(layer_additive_multiplicative(x2, wa2, wm2))
    ref2 = _reference(x2, wa2, wm2)
    assert out2.shape == (B2, F_OUT2)
    assert not bool(jnp.isnan(out2).any())
    assert jnp.allclose(out2, ref2, rtol=2e-3, atol=1e-2), "split path mismatch"

    print("KERNEL_OK")
</pallas_src>

<mosaic_0001>
module attributes {stable_mosaic.version = 11 : i64} {
  func.func @_am_kernel_fused(%arg0: i32, %arg1: memref<8x32xf32, #tpu.memory_space<vmem>>, %arg2: memref<64x32xf32, #tpu.memory_space<vmem>>, %arg3: memref<8x32xf32, #tpu.memory_space<vmem>>) attributes {dimension_semantics = [#tpu.dimension_semantics<parallel>], iteration_bounds = array<i64: 1>, scalar_prefetch = 0 : i64, scratch_operands = 0 : i64, tpu.core_type = #tpu.core_type<tc>, window_params = [{transform_indices = @transform_0, window_bounds = array<i64: 8, 32>}, {pipeline_mode = #tpu.pipeline_mode<synchronous>, transform_indices = @transform_1, window_bounds = array<i64: 64, 32>}, {transform_indices = @transform_2, window_bounds = array<i64: 8, 32>}]} {
    %c0 = arith.constant 0 : index
    %c0_0 = arith.constant 0 : index
    %0 = vector.load %arg1[%c0, %c0_0] : memref<8x32xf32, #tpu.memory_space<vmem>>, vector<8x32xf32>
    %cst = arith.constant -1.000000e+01 : f32
    %cst_1 = arith.constant 1.000000e+01 : f32
    %1 = vector.broadcast %cst : f32 to vector<8x32xf32>
    %2 = arith.maximumf %1, %0 : vector<8x32xf32>
    %3 = vector.broadcast %cst_1 : f32 to vector<8x32xf32>
    %4 = arith.minimumf %3, %2 : vector<8x32xf32>
    %cst_2 = arith.constant 1.000000e+02 : f32
    %5 = vector.broadcast %cst_2 : f32 to vector<8x32xf32>
    %6 = arith.addf %4, %5 : vector<8x32xf32>
    %cst_3 = arith.constant 9.99999971E-10 : f32
    %cst_4 = arith.constant 1.000000e+09 : f32
    %7 = vector.broadcast %cst_3 : f32 to vector<8x32xf32>
    %8 = arith.maximumf %7, %6 : vector<8x32xf32>
    %9 = vector.broadcast %cst_4 : f32 to vector<8x32xf32>
    %10 = arith.minimumf %9, %8 : vector<8x32xf32>
    %11 = math.log %10 : vector<8x32xf32>
    %12 = tpu.concatenate %4, %11 in 1 : vector<8x32xf32>, vector<8x32xf32> -> vector<8x64xf32>
    %c0_5 = arith.constant 0 : index
    %c0_6 = arith.constant 0 : index
    %13 = vector.load %arg2[%c0_5, %c0_6] : memref<64x32xf32, #tpu.memory_space<vmem>>, vector<64x32xf32>
    %cst_7 = arith.constant dense<0.000000e+00> : vector<8x32xf32>
    %14 = tpu.matmul %12, %13, %cst_7 {dimension_numbers = #tpu.dot_dimension_numbers<[1], [0], [0], [1], [0, 0, 1, 1], [], []>} : vector<8x64xf32>, vector<64x32xf32>, vector<8x32xf32> -> vector<8x32xf32>
    %15 = tpu.iota {dimensions = array<i32: 1>} : vector<8x32xi32>
    %cst_8 = arith.constant -2.000000e+01 : f32
    %cst_9 = arith.constant 2.000000e+01 : f32
    %16 = vector.broadcast %cst_8 : f32 to vector<8x32xf32>
    %17 = arith.maximumf %16, %14 : vector<8x32xf32>
    %18 = vector.broadcast %cst_9 : f32 to vector<8x32xf32>
    %19 = arith.minimumf %18, %17 : vector<8x32xf32>
    %20 = math.exp %19 : vector<8x32xf32>
    %cst_10 = arith.constant 1.000000e+02 : f32
    %21 = vector.broadcast %cst_10 : f32 to vector<8x32xf32>
    %22 = arith.subf %20, %21 : vector<8x32xf32>
    %c16_i32 = arith.constant 16 : i32
    %23 = vector.broadcast %c16_i32 : i32 to vector<8x32xi32>
    %24 = arith.cmpi sge, %15, %23 : vector<8x32xi32>
    %25 = arith.select %24, %22, %14 : vector<8x32xi1>, vector<8x32xf32>
    %cst_11 = arith.constant 0.000000e+00 : f32
    %26 = vector.broadcast %cst_11 : f32 to vector<8x32xf32>
    %27 = arith.maximumf %25, %26 : vector<8x32xf32>
    %c0_12 = arith.constant 0 : index
    %c0_13 = arith.constant 0 : index
    %28 = vector.load %arg3[%c0_12, %c0_13] : memref<8x32xf32, #tpu.memory_space<vmem>>, vector<8x32xf32>
    tpu.vector_store %arg3[%c0_12, %c0_13], %27 {strides = array<i32>} : memref<8x32xf32, #tpu.memory_space<vmem>>, vector<8x32xf32>,
    return
  }
  func.func @transform_0(%arg0: i32) -> (i32, i32) {
    %c0_i32 = arith.constant 0 : i32
    %c0_i32_0 = arith.constant 0 : i32
    return %arg0, %c0_i32 : i32, i32
  }
  func.func @transform_1(%arg0: i32) -> (i32, i32) {
    %c0_i32 = arith.constant 0 : i32
    %c0_i32_0 = arith.constant 0 : i32
    %c0_i32_1 = arith.constant 0 : i32
    return %c0_i32, %c0_i32_0 : i32, i32
  }
  func.func @transform_2(%arg0: i32) -> (i32, i32) {
    %c0_i32 = arith.constant 0 : i32
    %c0_i32_0 = arith.constant 0 : i32
    return %arg0, %c0_i32 : i32, i32
  }
}

module attributes {stable_mosaic.version = 11 : i64} {
  func.func @_am_kernel_fused(%arg0: i32, %arg1: memref<8x32xf32, #tpu.memory_space<vmem>>, %arg2: memref<64x32xf32, #tpu.memory_space<vmem>>, %arg3: memref<8x32xf32, #tpu.memory_space<vmem>>) attributes {dimension_semantics = [#tpu.dimension_semantics<parallel>], iteration_bounds = array<i64: 1>, scalar_prefetch = 0 : i64, scratch_operands = 0 : i64, tpu.core_type = #tpu.core_type<tc>, window_params = [{transform_indices = @transform_0, window_bounds = array<i64: 8, 32>}, {pipeline_mode = #tpu.pipeline_mode<synchronous>, transform_indices = @transform_1, window_bounds = array<i64: 64, 32>}, {transform_indices = @transform_2, window_bounds = array<i64: 8, 32>}]} {
    %c0 = arith.constant 0 : index
    %c0_0 = arith.constant 0 : index
    %0 = vector.load %arg1[%c0, %c0_0] : memref<8x32xf32, #tpu.memory_space<vmem>>, vector<8x32xf32>
    %cst = arith.constant -1.000000e+01 : f32
    %cst_1 = arith.constant 1.000000e+01 : f32
    %1 = vector.broadcast %cst : f32 to vector<8x32xf32>
    %2 = arith.maximumf %1, %0 : vector<8x32xf32>
    %3 = vector.broadcast %cst_1 : f32 to vector<8x32xf32>
    %4 = arith.minimumf %3, %2 : vector<8x32xf32>
    %cst_2 = arith.constant 1.000000e+02 : f32
    %5 = vector.broadcast %cst_2 : f32 to vector<8x32xf32>
    %6 = arith.addf %4, %5 : vector<8x32xf32>
    %cst_3 = arith.constant 9.99999971E-10 : f32
    %cst_4 = arith.constant 1.000000e+09 : f32
    %7 = vector.broadcast %cst_3 : f32 to vector<8x32xf32>
    %8 = arith.maximumf %7, %6 : vector<8x32xf32>
    %9 = vector.broadcast %cst_4 : f32 to vector<8x32xf32>
    %10 = arith.minimumf %9, %8 : vector<8x32xf32>
    %11 = math.log %10 : vector<8x32xf32>
    %12 = tpu.concatenate %4, %11 in 1 : vector<8x32xf32>, vector<8x32xf32> -> vector<8x64xf32>
    %c0_5 = arith.constant 0 : index
    %c0_6 = arith.constant 0 : index
    %13 = vector.load %arg2[%c0_5, %c0_6] : memref<64x32xf32, #tpu.memory_space<vmem>>, vector<64x32xf32>
    %cst_7 = arith.constant dense<0.000000e+00> : vector<8x32xf32>
    %14 = tpu.matmul %12, %13, %cst_7 {dimension_numbers = #tpu.dot_dimension_numbers<[1], [0], [0], [1], [0, 0, 1, 1], [], []>} : vector<8x64xf32>, vector<64x32xf32>, vector<8x32xf32> -> vector<8x32xf32>
    %15 = tpu.iota {dimensions = array<i32: 1>} : vector<8x32xi32>
    %cst_8 = arith.constant -2.000000e+01 : f32
    %cst_9 = arith.constant 2.000000e+01 : f32
    %16 = vector.broadcast %cst_8 : f32 to vector<8x32xf32>
    %17 = arith.maximumf %16, %14 : vector<8x32xf32>
    %18 = vector.broadcast %cst_9 : f32 to vector<8x32xf32>
    %19 = arith.minimumf %18, %17 : vector<8x32xf32>
    %20 = math.exp %19 : vector<8x32xf32>
    %cst_10 = arith.constant 1.000000e+02 : f32
    %21 = vector.broadcast %cst_10 : f32 to vector<8x32xf32>
    %22 = arith.subf %20, %21 : vector<8x32xf32>
    %c16_i32 = arith.constant 16 : i32
    %23 = vector.broadcast %c16_i32 : i32 to vector<8x32xi32>
    %24 = arith.cmpi sge, %15, %23 : vector<8x32xi32>
    %25 = arith.select %24, %22, %14 : vector<8x32xi1>, vector<8x32xf32>
    %cst_11 = arith.constant 0.000000e+00 : f32
    %26 = vector.broadcast %cst_11 : f32 to vector<8x32xf32>
    %27 = arith.maximumf %25, %26 : vector<8x32xf32>
    %c0_12 = arith.constant 0 : index
    %c0_13 = arith.constant 0 : index
    %28 = vector.load %arg3[%c0_12, %c0_13] : memref<8x32xf32, #tpu.memory_space<vmem>>, vector<8x32xf32>
    tpu.vector_store %arg3[%c0_12, %c0_13], %27 {strides = array<i32>} : memref<8x32xf32, #tpu.memory_space<vmem>>, vector<8x32xf32>,
    return
  }
  func.func @transform_0(%arg0: i32) -> (i32, i32) {
    %c0_i32 = arith.constant 0 : i32
    %c0_i32_0 = arith.constant 0 : i32
    return %arg0, %c0_i32 : i32, i32
  }
  func.func @transform_1(%arg0: i32) -> (i32, i32) {
    %c0_i32 = arith.constant 0 : i32
    %c0_i32_0 = arith.constant 0 : i32
    %c0_i32_1 = arith.constant 0 : i32
    return %c0_i32, %c0_i32_0 : i32, i32
  }
  func.func @transform_2(%arg0: i32) -> (i32, i32) {
    %c0_i32 = arith.constant 0 : i32
    %c0_i32_0 = arith.constant 0 : i32
    return %arg0, %c0_i32 : i32, i32
  }
}

</mosaic_0001>

<llo_original>
// kernel: tpu_custom_call.1
$region0: #{tpu_custom_call.1}
  #allocation0 [shape = 'u32[]', space=smem, size = 0x4, offset = 0x4, fixed_abs, tag = 'smem constant byte address 0x4 - core index']
  #allocation1 [shape = 'u32[144,128]{1,0:T(1,128)}', space=vmem, size = 0x12000, scoped, tag = 'internal scratch']
  %s0 = inlined_call_operand.vmem [shape: f32[8,32], index: 0, kind: input, shape index: {}]
  %s1 = inlined_call_operand.vmem [shape: f32[64,32], index: 1, kind: input, shape index: {}]
  %s2 = inlined_call_operand.hbm [shape: f32[8,32], index: 2, kind: output, shape index: {}]
  %s3 = sld [smem:[#allocation0]]
  $region18: #{tpu_custom_call.1} parent=0
    _
  %s5 = ssub.s32 1, %s3
  %s6 = scalar_select 0, %s5, %s3
  $region1: #{tpu_custom_call.1} parent=0
    #allocation2 [shape = 'u8[4096]{0}', space=vmem, size = 0x1000, scoped, tag = 'output window, operand 0, single buffered']
    #allocation3 [shape = 's32[1]{0}', space=sflag, size = 0x4, scoped, tag = 'scoped memory for tpu_custom_call.1']
    %7 = vsyncpa [#allocation3], 0
    // Predicated region
    $region2: #{tpu_custom_call.1} parent=1 // pred_check
      _
    $region3: #{tpu_custom_call.1} parent=1 // pred_check_branch
      %9 = sbr.rel (0) target = $region5
    $region4: #{tpu_custom_call.1} parent=1 // pred_region
      _
    $region5: #{tpu_custom_call.1} parent=1 // pred_fallthru
      _
    // Predicated region
    $region6: #{tpu_custom_call.1} parent=1 // pred_check
      _
    $region7: #{tpu_custom_call.1} parent=1 // pred_check_branch
      %11 = sbr.rel (0) target = $region9
    $region8: #{tpu_custom_call.1} parent=1 // pred_region
      _
    $region9: #{tpu_custom_call.1} parent=1 // pred_fallthru
      _
    %v12 = vld [vmem:[%s0] sm:$0xff]
    %v13 = vmax.f32 %v12, -10.0
    %v14 = vmin.f32 %v13, 10.0
    %v15 = vadd.f32 %v14, 100.0
    %v16 = vmax.f32 %v15, 1e-09
    %v17 = vmin.f32 %v16, 1e+09
    %v18 = vlog2.pop %v17
    %v19 = vmul.f32 %v18, 0.6931472
    %21 = vrot.lane.b32.xlu0 %v19, 32
    %v22 = vpop.permute.xlu0 %21
    %vm24 = vcmask 261120
    %v25 = vsel %vm24, %v14, %v22
    %v26 = vld [vmem:[%s1] sm:$0xff]
    %v27 = vld [vmem:[%s1 + $0x8] sm:$0xff]
    %v28 = vld [vmem:[%s1 + $0x10] sm:$0xff]
    %v29 = vld [vmem:[%s1 + $0x18] sm:$0xff]
    %v30 = vld [vmem:[%s1 + $0x20] sm:$0xff]
    %v31 = vld [vmem:[%s1 + $0x28] sm:$0xff]
    %v32 = vld [vmem:[%s1 + $0x30] sm:$0xff]
    %v33 = vld [vmem:[%s1 + $0x38] sm:$0xff]
    %vm34 = vcmask 523264
    %v36 = vsel %vm34, %v25, 0
    %38 = vmatprep.subr.mxu0 0.0
    %39 = vmatpush1.msra.mxu0 0.0
    %40 = vmatprep.subr.mxu0 0.0
    %41 = vmatpush1.msra.mxu0 0.0
    %42 = vmatprep.subr.mxu0 0.0
    %43 = vmatpush1.msra.mxu0 0.0
    %44 = vmatprep.subr.mxu0 0.0
    %45 = vmatpush1.msra.mxu0 0.0
    %46 = vmatprep.subr.mxu0 0.0
    %47 = vmatpush1.msra.mxu0 0.0
    %48 = vmatprep.subr.mxu0 0.0
    %49 = vmatpush1.msra.mxu0 0.0
    %50 = vmatprep.subr.mxu0 0.0
    %51 = vmatpush1.msra.mxu0 0.0
    %52 = vmatprep.subr.mxu0 0.0
    %53 = vmatpush1.msra.mxu0 0.0
    %54 = vmatprep.subr.mxu0 0.0
    %55 = vmatpush1.msra.mxu0 %v33
    %56 = vmatprep.subr.mxu0 0.0
    %57 = vmatpush1.msra.mxu0 %v32
    %58 = vmatprep.subr.mxu0 0.0
    %59 = vmatpush1.msra.mxu0 %v31
    %60 = vmatprep.subr.mxu0 0.0
    %61 = vmatpush1.msra.mxu0 %v30
    %62 = vmatprep.subr.mxu0 0.0
    %63 = vmatpush1.msra.mxu0 %v29
    %64 = vmatprep.subr.mxu0 0.0
    %65 = vmatpush1.msra.mxu0 %v28
    %66 = vmatprep.subr.mxu0 0.0
    %67 = vmatpush1.msra.mxu0 %v27
    %68 = vmatprep.subr.mxu0 0.0
    %69 = vmatpush1.msra.mxu0 %v26
    %70 = vmatprep.subr.mxu0 0.0
    %71 = vmatpush2.msra.mxu0 0.0
    %72 = vmatprep.subr.mxu0 0.0
    %73 = vmatpush2.msra.mxu0 0.0
    %74 = vmatprep.subr.mxu0 0.0
    %75 = vmatpush2.msra.mxu0 0.0
    %76 = vmatprep.subr.mxu0 0.0
    %77 = vmatpush2.msra.mxu0 0.0
    %78 = vmatprep.subr.mxu0 0.0
    %79 = vmatpush2.msra.mxu0 0.0
    %80 = vmatprep.subr.mxu0 0.0
    %81 = vmatpush2.msra.mxu0 0.0
    %82 = vmatprep.subr.mxu0 0.0
    %83 = vmatpush2.msra.mxu0 0.0
    %84 = vmatprep.subr.mxu0 0.0
    %85 = vmatpush2.msra.mxu0 0.0
    %86 = vmatprep.subr.mxu0 0.0
    %87 = vmatpush2.msra.mxu0 0.0
    %88 = vmatprep.subr.mxu0 0.0
    %89 = vmatpush2.msra.mxu0 0.0
    %90 = vmatprep.subr.mxu0 0.0
    %91 = vmatpush2.msra.mxu0 0.0
    %92 = vmatprep.subr.mxu0 0.0
    %93 = vmatpush2.msra.mxu0 0.0
    %94 = vmatprep.subr.mxu0 0.0
    %95 = vmatpush2.msra.mxu0 0.0
    %96 = vmatprep.subr.mxu0 0.0
    %97 = vmatpush2.msra.mxu0 0.0
    %98 = vmatprep.subr.mxu0 0.0
    %99 = vmatpush2.msra.mxu0 0.0
    %100 = vmatprep.subr.mxu0 0.0
    %101 = vmatpush2.msra.mxu0 0.0
    %102 = vmatprep.mubr.f32.mxu0 0.0
    %103 = vmatmul.mubr.f32.gmra.mxu0 %v36
    %v104 = vpop.f32.mrf.mxu0
    %v105 = vadd.f32 0.0, %v104
    %v106 = vpop.f32.mrf.mxu0
    %107 = vdwg.mxu0
    %v108 = vlaneseq
    %v109 = vand.u32 %v108, 127
    %v110 = vmax.f32 %v105, -20.0
    %v111 = vmin.f32 %v110, 20.0
    %v112 = vmul.f32 %v111, 1.442695
    %v113 = vpow.pop %v112
    %v114 = vsub.f32 %v113, 100.0
    %vm115 = vcmp.ge.s32.totalorder %v109, 16
    %v116 = vsel %vm115, %v114, %v105
    %v117 = vmax.f32 %v116, 0.0
    %118 = vst.msk [vmem:[#allocation2] sm:$0xff] %vm24, %v117
    // Predicated region
    $region10: #{tpu_custom_call.1} parent=1 // pred_check
      _
    $region11: #{tpu_custom_call.1} parent=1 // pred_check_branch
      %120 = sbr.rel (0) target = $region13
    $region12: #{tpu_custom_call.1} parent=1 // pred_region
      %s122 = ssub.s32 128, 128
      %123 = vsyncadd [#allocation3], %s122
      %s125 = sshll.u32 [#allocation2], 4
      %s126 = int_to_ptr.vmem [resolvable:$true] %s125
      %128 = dma.vmem_to_hbm [thread:$0]  %s126, 128, %s2, [#allocation3]
    $region13: #{tpu_custom_call.1} parent=1 // pred_fallthru
      _
    // Predicated region
    $region14: #{tpu_custom_call.1} parent=1 // pred_check
      _
    $region15: #{tpu_custom_call.1} parent=1 // pred_check_branch
      %130 = sbr.rel (0) target = $region17
    $region16: #{tpu_custom_call.1} parent=1 // pred_region
      %131 = dma.done [#allocation3], 128
    $region17: #{tpu_custom_call.1} parent=1 // pred_fallthru
      _
    %132 = vsyncpa [#allocation3], 1

// kernel: tpu_custom_call.1
$region0: #{tpu_custom_call.1}
  #allocation0 [shape = 'u32[]', space=smem, size = 0x4, offset = 0x4, fixed_abs, tag = 'smem constant byte address 0x4 - core index']
  #allocation1 [shape = 'u32[144,128]{1,0:T(1,128)}', space=vmem, size = 0x12000, scoped, tag = 'internal scratch']
  %s0 = inlined_call_operand.vmem [shape: f32[8,32], index: 0, kind: input, shape index: {}]
  %s1 = inlined_call_operand.vmem [shape: f32[64,32], index: 1, kind: input, shape index: {}]
  %s2 = inlined_call_operand.hbm [shape: f32[8,32], index: 2, kind: output, shape index: {}]
  %s3 = sld [smem:[#allocation0]]
  $region18: #{tpu_custom_call.1} parent=0
    _
  %s5 = ssub.s32 1, %s3
  %s6 = scalar_select 0, %s5, %s3
  $region1: #{tpu_custom_call.1} parent=0
    #allocation2 [shape = 'u8[4096]{0}', space=vmem, size = 0x1000, scoped, tag = 'output window, operand 0, single buffered']
    #allocation3 [shape = 's32[1]{0}', space=sflag, size = 0x4, scoped, tag = 'scoped memory for tpu_custom_call.1']
    %7 = vsyncpa [#allocation3], 0
    // Predicated region
    $region2: #{tpu_custom_call.1} parent=1 // pred_check
      _
    $region3: #{tpu_custom_call.1} parent=1 // pred_check_branch
      %9 = sbr.rel (0) target = $region5
    $region4: #{tpu_custom_call.1} parent=1 // pred_region
      _
    $region5: #{tpu_custom_call.1} parent=1 // pred_fallthru
      _
    // Predicated region
    $region6: #{tpu_custom_call.1} parent=1 // pred_check
      _
    $region7: #{tpu_custom_call.1} parent=1 // pred_check_branch
      %11 = sbr.rel (0) target = $region9
    $region8: #{tpu_custom_call.1} parent=1 // pred_region
      _
    $region9: #{tpu_custom_call.1} parent=1 // pred_fallthru
      _
    %v12 = vld [vmem:[%s0] sm:$0xff]
    %v13 = vmax.f32 %v12, -10.0
    %v14 = vmin.f32 %v13, 10.0
    %v15 = vadd.f32 %v14, 100.0
    %v16 = vmax.f32 %v15, 1e-09
    %v17 = vmin.f32 %v16, 1e+09
    %v18 = vlog2.pop %v17
    %v19 = vmul.f32 %v18, 0.6931472
    %21 = vrot.lane.b32.xlu0 %v19, 32
    %v22 = vpop.permute.xlu0 %21
    %vm24 = vcmask 261120
    %v25 = vsel %vm24, %v14, %v22
    %v26 = vld [vmem:[%s1] sm:$0xff]
    %v27 = vld [vmem:[%s1 + $0x8] sm:$0xff]
    %v28 = vld [vmem:[%s1 + $0x10] sm:$0xff]
    %v29 = vld [vmem:[%s1 + $0x18] sm:$0xff]
    %v30 = vld [vmem:[%s1 + $0x20] sm:$0xff]
    %v31 = vld [vmem:[%s1 + $0x28] sm:$0xff]
    %v32 = vld [vmem:[%s1 + $0x30] sm:$0xff]
    %v33 = vld [vmem:[%s1 + $0x38] sm:$0xff]
    %vm34 = vcmask 523264
    %v36 = vsel %vm34, %v25, 0
    %38 = vmatprep.subr.mxu0 0.0
    %39 = vmatpush1.msra.mxu0 0.0
    %40 = vmatprep.subr.mxu0 0.0
    %41 = vmatpush1.msra.mxu0 0.0
    %42 = vmatprep.subr.mxu0 0.0
    %43 = vmatpush1.msra.mxu0 0.0
    %44 = vmatprep.subr.mxu0 0.0
    %45 = vmatpush1.msra.mxu0 0.0
    %46 = vmatprep.subr.mxu0 0.0
    %47 = vmatpush1.msra.mxu0 0.0
    %48 = vmatprep.subr.mxu0 0.0
    %49 = vmatpush1.msra.mxu0 0.0
    %50 = vmatprep.subr.mxu0 0.0
    %51 = vmatpush1.msra.mxu0 0.0
    %52 = vmatprep.subr.mxu0 0.0
    %53 = vmatpush1.msra.mxu0 0.0
    %54 = vmatprep.subr.mxu0 0.0
    %55 = vmatpush1.msra.mxu0 %v33
    %56 = vmatprep.subr.mxu0 0.0
    %57 = vmatpush1.msra.mxu0 %v32
    %58 = vmatprep.subr.mxu0 0.0
    %59 = vmatpush1.msra.mxu0 %v31
    %60 = vmatprep.subr.mxu0 0.0
    %61 = vmatpush1.msra.mxu0 %v30
    %62 = vmatprep.subr.mxu0 0.0
    %63 = vmatpush1.msra.mxu0 %v29
    %64 = vmatprep.subr.mxu0 0.0
    %65 = vmatpush1.msra.mxu0 %v28
    %66 = vmatprep.subr.mxu0 0.0
    %67 = vmatpush1.msra.mxu0 %v27
    %68 = vmatprep.subr.mxu0 0.0
    %69 = vmatpush1.msra.mxu0 %v26
    %70 = vmatprep.subr.mxu0 0.0
    %71 = vmatpush2.msra.mxu0 0.0
    %72 = vmatprep.subr.mxu0 0.0
    %73 = vmatpush2.msra.mxu0 0.0
    %74 = vmatprep.subr.mxu0 0.0
    %75 = vmatpush2.msra.mxu0 0.0
    %76 = vmatprep.subr.mxu0 0.0
    %77 = vmatpush2.msra.mxu0 0.0
    %78 = vmatprep.subr.mxu0 0.0
    %79 = vmatpush2.msra.mxu0 0.0
    %80 = vmatprep.subr.mxu0 0.0
    %81 = vmatpush2.msra.mxu0 0.0
    %82 = vmatprep.subr.mxu0 0.0
    %83 = vmatpush2.msra.mxu0 0.0
    %84 = vmatprep.subr.mxu0 0.0
    %85 = vmatpush2.msra.mxu0 0.0
    %86 = vmatprep.subr.mxu0 0.0
    %87 = vmatpush2.msra.mxu0 0.0
    %88 = vmatprep.subr.mxu0 0.0
    %89 = vmatpush2.msra.mxu0 0.0
    %90 = vmatprep.subr.mxu0 0.0
    %91 = vmatpush2.msra.mxu0 0.0
    %92 = vmatprep.subr.mxu0 0.0
    %93 = vmatpush2.msra.mxu0 0.0
    %94 = vmatprep.subr.mxu0 0.0
    %95 = vmatpush2.msra.mxu0 0.0
    %96 = vmatprep.subr.mxu0 0.0
    %97 = vmatpush2.msra.mxu0 0.0
    %98 = vmatprep.subr.mxu0 0.0
    %99 = vmatpush2.msra.mxu0 0.0
    %100 = vmatprep.subr.mxu0 0.0
    %101 = vmatpush2.msra.mxu0 0.0
    %102 = vmatprep.mubr.f32.mxu0 0.0
    %103 = vmatmul.mubr.f32.gmra.mxu0 %v36
    %v104 = vpop.f32.mrf.mxu0
    %v105 = vadd.f32 0.0, %v104
    %v106 = vpop.f32.mrf.mxu0
    %107 = vdwg.mxu0
    %v108 = vlaneseq
    %v109 = vand.u32 %v108, 127
    %v110 = vmax.f32 %v105, -20.0
    %v111 = vmin.f32 %v110, 20.0
    %v112 = vmul.f32 %v111, 1.442695
    %v113 = vpow.pop %v112
    %v114 = vsub.f32 %v113, 100.0
    %vm115 = vcmp.ge.s32.totalorder %v109, 16
    %v116 = vsel %vm115, %v114, %v105
    %v117 = vmax.f32 %v116, 0.0
    %118 = vst.msk [vmem:[#allocation2] sm:$0xff] %vm24, %v117
    // Predicated region
    $region10: #{tpu_custom_call.1} parent=1 // pred_check
      _
    $region11: #{tpu_custom_call.1} parent=1 // pred_check_branch
      %120 = sbr.rel (0) target = $region13
    $region12: #{tpu_custom_call.1} parent=1 // pred_region
      %s122 = ssub.s32 128, 128
      %123 = vsyncadd [#allocation3], %s122
      %s125 = sshll.u32 [#allocation2], 4
      %s126 = int_to_ptr.vmem [resolvable:$true] %s125
      %128 = dma.vmem_to_hbm [thread:$0]  %s126, 128, %s2, [#allocation3]
    $region13: #{tpu_custom_call.1} parent=1 // pred_fallthru
      _
    // Predicated region
    $region14: #{tpu_custom_call.1} parent=1 // pred_check
      _
    $region15: #{tpu_custom_call.1} parent=1 // pred_check_branch
      %130 = sbr.rel (0) target = $region17
    $region16: #{tpu_custom_call.1} parent=1 // pred_region
      %131 = dma.done [#allocation3], 128
    $region17: #{tpu_custom_call.1} parent=1 // pred_fallthru
      _
    %132 = vsyncpa [#allocation3], 1

</llo_original>
